<compile_context>
chip_gen: v7x
topology: tpu7x:2x2x1
jax: 0.10.0
libtpu: 0.0.40
codegen_flags: <defaults>
</compile_context>

<pallas_src>
import functools

import jax
import jax.numpy as jnp
from jax.experimental import pallas as pl
from jax.experimental.pallas import tpu as pltpu

# ---------------- model dims ----------------
VOCAB = 50
EMBED = 16
HIDDEN = 32
OUT = 2
BATCH = 2
SEQ = 8

LANE = 128      # vreg lane extent; 4*HIDDEN == LANE -> gates pack into one block
BPAD = 8        # batch padded to a full sublane tile
assert 4 * HIDDEN == LANE


def lstm_fc_kernel(xp_ref,     # (T*BPAD, 4H) f32  time-major token input-proj (+bias)
                   mask_ref,   # (T*BPAD, H)  f32  {0,1} = (t < length[b]), pre-broadcast
                   whh_ref,    # (H, 4H)      f32  W_hh^T, packed i|f|g|o gate order
                   wfc_ref,    # (H, LANE)    f32  column-padded fc weight^T
                   bfc_ref,    # (1, LANE)    f32  column-padded fc bias
                   out_ref):   # (BPAD, LANE) f32  lane-dense output
    TB = xp_ref.shape[0]
    Bp = out_ref.shape[0]
    H = whh_ref.shape[0]
    T = TB // Bp

    whh = whh_ref[...]                        # (32, 128) = 4 resident vregs
    xp = xp_ref[...]                          # (64, 128) = 8 resident vregs

    h = jnp.zeros((Bp, H), jnp.float32)       # carried in registers
    c = jnp.zeros((Bp, H), jnp.float32)

    # Static trip count -> fully unrolled; LLO can overlap adjacent steps' tails.
    for t in range(T):
        # One (8,32)x(32,128) MXU matmul per step -> single result vreg.
        gates = xp[t * Bp:(t + 1) * Bp, :] + jnp.dot(
            h, whh, preferred_element_type=jnp.float32)        # (Bp, 128)
        # Two whole-vreg EUP passes over all gates, then static lane sub-slices.
        # PyTorch gate order along lanes: i, f, g, o.
        sg = jax.nn.sigmoid(gates)
        tg = jnp.tanh(gates)
        i_g = sg[:, 0 * H:1 * H]
        f_g = sg[:, 1 * H:2 * H]
        g_g = tg[:, 2 * H:3 * H]
        o_g = sg[:, 3 * H:4 * H]
        c_new = f_g * c + i_g * g_g
        h_new = o_g * jnp.tanh(c_new)          # third (and last) EUP pass
        # pack_padded_sequence semantics: freeze state once t >= length[b].
        m = mask_ref[t * Bp:(t + 1) * Bp, :] != 0.0            # (Bp, H) bool
        c = jnp.where(m, c_new, c)             # single vsel per state
        h = jnp.where(m, h_new, h)

    # dropout(p=0 / eval) == identity; fc into a lane-dense padded output.
    out_ref[...] = (jnp.dot(h, wfc_ref[...], preferred_element_type=jnp.float32)
                    + bfc_ref[...]).astype(out_ref.dtype)


def prepare_params(params):
    """One-time weight prep (compose embedding with W_ih, transpose, pad)."""
    emb = params["emb"].astype(jnp.float32)                       # (V, E)
    w_ih_t = params["w_ih"].T.astype(jnp.float32)                 # (E, 4H)
    bias = (params["b_ih"] + params["b_hh"]).astype(jnp.float32)  # (4H,)
    # Composed lookup table: embedding followed by the LSTM input projection.
    table = emb @ w_ih_t + bias[None, :]                          # (V, 4H) = (50,128)

    whh_p = params["w_hh"].T.astype(jnp.float32)                  # (H, 4H) = (32,128)
    wfc_p = jnp.zeros((HIDDEN, LANE), jnp.float32).at[:, :OUT].set(
        params["w_fc"].T.astype(jnp.float32))                     # (H, 128)
    bfc_p = jnp.zeros((1, LANE), jnp.float32).at[:, :OUT].set(
        params["b_fc"].astype(jnp.float32)[None, :])              # (1, 128)
    return {"table": table, "whh": whh_p, "wfc": wfc_p, "bfc": bfc_p}


@functools.partial(jax.jit, static_argnames=())
def sentiment_lstm_forward(text, text_lengths, prep):
    """text: (B, T) int32 token ids; text_lengths: (B,) int32 (<= T)."""
    B, T = text.shape
    assert B <= BPAD

    # Embedding + input projection as a single row gather (plain-JAX glue).
    xp = prep["table"][text]                                      # (B, T, 4H)
    xp = jnp.pad(xp, ((0, BPAD - B), (0, 0), (0, 0)))             # (BPAD, T, 4H)
    xp = jnp.transpose(xp, (1, 0, 2)).reshape(T * BPAD, 4 * HIDDEN)

    # Per-step {0,1} masks, pre-broadcast over H lanes (padded rows get length 0).
    lens = jnp.pad(text_lengths.astype(jnp.int32), (0, BPAD - B))
    mask = (jnp.arange(T, dtype=jnp.int32)[:, None] < lens[None, :])  # (T, BPAD)
    mask = jnp.broadcast_to(mask[:, :, None].astype(jnp.float32),
                            (T, BPAD, HIDDEN)).reshape(T * BPAD, HIDDEN)

    vmem = pl.BlockSpec(memory_space=pltpu.MemorySpace.VMEM)
    out_pad = pl.pallas_call(
        lstm_fc_kernel,
        out_shape=jax.ShapeDtypeStruct((BPAD, LANE), jnp.float32),
        in_specs=[vmem] * 5,
        out_specs=vmem,
    )(xp, mask, prep["whh"], prep["wfc"], prep["bfc"])
    return out_pad[:B, :OUT]


def reference_forward(text, text_lengths, params):
    """Pure-JAX reference matching PyTorch semantics (for verification)."""
    emb = params["emb"][text].astype(jnp.float32)     # (B, T, E)
    B, T, _ = emb.shape
    H = HIDDEN
    h = jnp.zeros((B, H), jnp.float32)
    c = jnp.zeros((B, H), jnp.float32)
    for t in range(T):
        x_t = emb[:, t, :]
        gates = (x_t @ params["w_ih"].T + params["b_ih"]
                 + h @ params["w_hh"].T + params["b_hh"])
        i_g = jax.nn.sigmoid(gates[:, 0 * H:1 * H])
        f_g = jax.nn.sigmoid(gates[:, 1 * H:2 * H])
        g_g = jnp.tanh(gates[:, 2 * H:3 * H])
        o_g = jax.nn.sigmoid(gates[:, 3 * H:4 * H])
        c_new = f_g * c + i_g * g_g
        h_new = o_g * jnp.tanh(c_new)
        m = (t < text_lengths)[:, None]
        h = jnp.where(m, h_new, h)
        c = jnp.where(m, c_new, c)
    return h @ params["w_fc"].T + params["b_fc"]


def init_params(key):
    ks = jax.random.split(key, 7)
    scale = 0.1
    return {
        "emb":  scale * jax.random.normal(ks[0], (VOCAB, EMBED), jnp.float32),
        "w_ih": scale * jax.random.normal(ks[1], (4 * HIDDEN, EMBED), jnp.float32),
        "w_hh": scale * jax.random.normal(ks[2], (4 * HIDDEN, HIDDEN), jnp.float32),
        "b_ih": scale * jax.random.normal(ks[3], (4 * HIDDEN,), jnp.float32),
        "b_hh": scale * jax.random.normal(ks[4], (4 * HIDDEN,), jnp.float32),
        "w_fc": scale * jax.random.normal(ks[5], (OUT, HIDDEN), jnp.float32),
        "b_fc": scale * jax.random.normal(ks[6], (OUT,), jnp.float32),
    }


if __name__ == "__main__":
    key = jax.random.PRNGKey(0)
    pkey, tkey = jax.random.split(key)
    params = init_params(pkey)
    prep = jax.tree_util.tree_map(jax.block_until_ready, prepare_params(params))

    text = jax.random.randint(tkey, (BATCH, SEQ), 0, VOCAB, dtype=jnp.int32)
    text_lengths = jnp.array([SEQ, 5], dtype=jnp.int32)   # variable lengths <= SEQ

    out = sentiment_lstm_forward(text, text_lengths, prep)
    out = jax.block_until_ready(out)

    ref = reference_forward(text, text_lengths, params)
    assert out.shape == (BATCH, OUT)
    assert jnp.allclose(out, ref, atol=1e-5, rtol=1e-5), (out, ref)

    print("KERNEL_OK")
</pallas_src>

<mosaic_0001>
module attributes {stable_mosaic.version = 11 : i64} {
  func.func @lstm_fc_kernel(%arg0: memref<64x128xf32, #tpu.memory_space<vmem>>, %arg1: memref<64x32xf32, #tpu.memory_space<vmem>>, %arg2: memref<32x128xf32, #tpu.memory_space<vmem>>, %arg3: memref<32x128xf32, #tpu.memory_space<vmem>>, %arg4: memref<1x128xf32, #tpu.memory_space<vmem>>, %arg5: memref<8x128xf32, #tpu.memory_space<vmem>>) attributes {dimension_semantics = [], scalar_prefetch = 0 : i64, scratch_operands = 0 : i64, tpu.core_type = #tpu.core_type<tc>} {
    %c0 = arith.constant 0 : index
    %c0_0 = arith.constant 0 : index
    %0 = vector.load %arg2[%c0, %c0_0] : memref<32x128xf32, #tpu.memory_space<vmem>>, vector<32x128xf32>
    %c0_1 = arith.constant 0 : index
    %c0_2 = arith.constant 0 : index
    %1 = vector.load %arg0[%c0_1, %c0_2] : memref<64x128xf32, #tpu.memory_space<vmem>>, vector<64x128xf32>
    %cst = arith.constant 0.000000e+00 : f32
    %2 = vector.broadcast %cst : f32 to vector<8x32xf32>
    %cst_3 = arith.constant 0.000000e+00 : f32
    %3 = vector.broadcast %cst_3 : f32 to vector<8x32xf32>
    %4 = vector.extract_strided_slice %1 {offsets = [0, 0], sizes = [8, 128], strides = [1, 1]} : vector<64x128xf32> to vector<8x128xf32>
    %cst_4 = arith.constant dense<0.000000e+00> : vector<8x128xf32>
    %5 = tpu.matmul %2, %0, %cst_4 {dimension_numbers = #tpu.dot_dimension_numbers<[1], [0], [0], [1], [0, 0, 1, 1], [], []>} : vector<8x32xf32>, vector<32x128xf32>, vector<8x128xf32> -> vector<8x128xf32>
    %6 = arith.addf %4, %5 : vector<8x128xf32>
    %7 = arith.negf %6 : vector<8x128xf32>
    %8 = math.exp %7 : vector<8x128xf32>
    %cst_5 = arith.constant 1.000000e+00 : f32
    %9 = vector.broadcast %cst_5 : f32 to vector<8x128xf32>
    %10 = arith.addf %9, %8 : vector<8x128xf32>
    %11 = arith.divf %9, %10 : vector<8x128xf32>
    %12 = math.tanh %6 : vector<8x128xf32>
    %13 = vector.extract_strided_slice %11 {offsets = [0, 0], sizes = [8, 32], strides = [1, 1]} : vector<8x128xf32> to vector<8x32xf32>
    %14 = vector.extract_strided_slice %11 {offsets = [0, 32], sizes = [8, 32], strides = [1, 1]} : vector<8x128xf32> to vector<8x32xf32>
    %15 = vector.extract_strided_slice %12 {offsets = [0, 64], sizes = [8, 32], strides = [1, 1]} : vector<8x128xf32> to vector<8x32xf32>
    %16 = vector.extract_strided_slice %11 {offsets = [0, 96], sizes = [8, 32], strides = [1, 1]} : vector<8x128xf32> to vector<8x32xf32>
    %17 = arith.mulf %14, %3 : vector<8x32xf32>
    %18 = arith.mulf %13, %15 : vector<8x32xf32>
    %19 = arith.addf %17, %18 : vector<8x32xf32>
    %20 = math.tanh %19 : vector<8x32xf32>
    %21 = arith.mulf %16, %20 : vector<8x32xf32>
    %c0_6 = arith.constant 0 : index
    %c0_7 = arith.constant 0 : index
    %22 = vector.load %arg1[%c0_6, %c0_7] : memref<64x32xf32, #tpu.memory_space<vmem>>, vector<8x32xf32>
    %cst_8 = arith.constant 0.000000e+00 : f32
    %23 = vector.broadcast %cst_8 : f32 to vector<8x32xf32>
    %24 = arith.cmpf one, %22, %23 : vector<8x32xf32>
    %25 = arith.select %24, %19, %3 : vector<8x32xi1>, vector<8x32xf32>
    %26 = arith.select %24, %21, %2 : vector<8x32xi1>, vector<8x32xf32>
    %27 = vector.extract_strided_slice %1 {offsets = [8, 0], sizes = [8, 128], strides = [1, 1]} : vector<64x128xf32> to vector<8x128xf32>
    %cst_9 = arith.constant dense<0.000000e+00> : vector<8x128xf32>
    %28 = tpu.matmul %26, %0, %cst_9 {dimension_numbers = #tpu.dot_dimension_numbers<[1], [0], [0], [1], [0, 0, 1, 1], [], []>} : vector<8x32xf32>, vector<32x128xf32>, vector<8x128xf32> -> vector<8x128xf32>
    %29 = arith.addf %27, %28 : vector<8x128xf32>
    %30 = arith.negf %29 : vector<8x128xf32>
    %31 = math.exp %30 : vector<8x128xf32>
    %cst_10 = arith.constant 1.000000e+00 : f32
    %32 = vector.broadcast %cst_10 : f32 to vector<8x128xf32>
    %33 = arith.addf %32, %31 : vector<8x128xf32>
    %34 = arith.divf %32, %33 : vector<8x128xf32>
    %35 = math.tanh %29 : vector<8x128xf32>
    %36 = vector.extract_strided_slice %34 {offsets = [0, 0], sizes = [8, 32], strides = [1, 1]} : vector<8x128xf32> to vector<8x32xf32>
    %37 = vector.extract_strided_slice %34 {offsets = [0, 32], sizes = [8, 32], strides = [1, 1]} : vector<8x128xf32> to vector<8x32xf32>
    %38 = vector.extract_strided_slice %35 {offsets = [0, 64], sizes = [8, 32], strides = [1, 1]} : vector<8x128xf32> to vector<8x32xf32>
    %39 = vector.extract_strided_slice %34 {offsets = [0, 96], sizes = [8, 32], strides = [1, 1]} : vector<8x128xf32> to vector<8x32xf32>
    %40 = arith.mulf %37, %25 : vector<8x32xf32>
    %41 = arith.mulf %36, %38 : vector<8x32xf32>
    %42 = arith.addf %40, %41 : vector<8x32xf32>
    %43 = math.tanh %42 : vector<8x32xf32>
    %44 = arith.mulf %39, %43 : vector<8x32xf32>
    %c8 = arith.constant 8 : index
    %c0_11 = arith.constant 0 : index
    %45 = vector.load %arg1[%c8, %c0_11] : memref<64x32xf32, #tpu.memory_space<vmem>>, vector<8x32xf32>
    %cst_12 = arith.constant 0.000000e+00 : f32
    %46 = vector.broadcast %cst_12 : f32 to vector<8x32xf32>
    %47 = arith.cmpf one, %45, %46 : vector<8x32xf32>
    %48 = arith.select %47, %42, %25 : vector<8x32xi1>, vector<8x32xf32>
    %49 = arith.select %47, %44, %26 : vector<8x32xi1>, vector<8x32xf32>
    %50 = vector.extract_strided_slice %1 {offsets = [16, 0], sizes = [8, 128], strides = [1, 1]} : vector<64x128xf32> to vector<8x128xf32>
    %cst_13 = arith.constant dense<0.000000e+00> : vector<8x128xf32>
    %51 = tpu.matmul %49, %0, %cst_13 {dimension_numbers = #tpu.dot_dimension_numbers<[1], [0], [0], [1], [0, 0, 1, 1], [], []>} : vector<8x32xf32>, vector<32x128xf32>, vector<8x128xf32> -> vector<8x128xf32>
    %52 = arith.addf %50, %51 : vector<8x128xf32>
    %53 = arith.negf %52 : vector<8x128xf32>
    %54 = math.exp %53 : vector<8x128xf32>
    %cst_14 = arith.constant 1.000000e+00 : f32
    %55 = vector.broadcast %cst_14 : f32 to vector<8x128xf32>
    %56 = arith.addf %55, %54 : vector<8x128xf32>
    %57 = arith.divf %55, %56 : vector<8x128xf32>
    %58 = math.tanh %52 : vector<8x128xf32>
    %59 = vector.extract_strided_slice %57 {offsets = [0, 0], sizes = [8, 32], strides = [1, 1]} : vector<8x128xf32> to vector<8x32xf32>
    %60 = vector.extract_strided_slice %57 {offsets = [0, 32], sizes = [8, 32], strides = [1, 1]} : vector<8x128xf32> to vector<8x32xf32>
    %61 = vector.extract_strided_slice %58 {offsets = [0, 64], sizes = [8, 32], strides = [1, 1]} : vector<8x128xf32> to vector<8x32xf32>
    %62 = vector.extract_strided_slice %57 {offsets = [0, 96], sizes = [8, 32], strides = [1, 1]} : vector<8x128xf32> to vector<8x32xf32>
    %63 = arith.mulf %60, %48 : vector<8x32xf32>
    %64 = arith.mulf %59, %61 : vector<8x32xf32>
    %65 = arith.addf %63, %64 : vector<8x32xf32>
    %66 = math.tanh %65 : vector<8x32xf32>
    %67 = arith.mulf %62, %66 : vector<8x32xf32>
    %c16 = arith.constant 16 : index
    %c0_15 = arith.constant 0 : index
    %68 = vector.load %arg1[%c16, %c0_15] : memref<64x32xf32, #tpu.memory_space<vmem>>, vector<8x32xf32>
    %cst_16 = arith.constant 0.000000e+00 : f32
    %69 = vector.broadcast %cst_16 : f32 to vector<8x32xf32>
    %70 = arith.cmpf one, %68, %69 : vector<8x32xf32>
    %71 = arith.select %70, %65, %48 : vector<8x32xi1>, vector<8x32xf32>
    %72 = arith.select %70, %67, %49 : vector<8x32xi1>, vector<8x32xf32>
    %73 = vector.extract_strided_slice %1 {offsets = [24, 0], sizes = [8, 128], strides = [1, 1]} : vector<64x128xf32> to vector<8x128xf32>
    %cst_17 = arith.constant dense<0.000000e+00> : vector<8x128xf32>
    %74 = tpu.matmul %72, %0, %cst_17 {dimension_numbers = #tpu.dot_dimension_numbers<[1], [0], [0], [1], [0, 0, 1, 1], [], []>} : vector<8x32xf32>, vector<32x128xf32>, vector<8x128xf32> -> vector<8x128xf32>
    %75 = arith.addf %73, %74 : vector<8x128xf32>
    %76 = arith.negf %75 : vector<8x128xf32>
    %77 = math.exp %76 : vector<8x128xf32>
    %cst_18 = arith.constant 1.000000e+00 : f32
    %78 = vector.broadcast %cst_18 : f32 to vector<8x128xf32>
    %79 = arith.addf %78, %77 : vector<8x128xf32>
    %80 = arith.divf %78, %79 : vector<8x128xf32>
    %81 = math.tanh %75 : vector<8x128xf32>
    %82 = vector.extract_strided_slice %80 {offsets = [0, 0], sizes = [8, 32], strides = [1, 1]} : vector<8x128xf32> to vector<8x32xf32>
    %83 = vector.extract_strided_slice %80 {offsets = [0, 32], sizes = [8, 32], strides = [1, 1]} : vector<8x128xf32> to vector<8x32xf32>
    %84 = vector.extract_strided_slice %81 {offsets = [0, 64], sizes = [8, 32], strides = [1, 1]} : vector<8x128xf32> to vector<8x32xf32>
    %85 = vector.extract_strided_slice %80 {offsets = [0, 96], sizes = [8, 32], strides = [1, 1]} : vector<8x128xf32> to vector<8x32xf32>
    %86 = arith.mulf %83, %71 : vector<8x32xf32>
    %87 = arith.mulf %82, %84 : vector<8x32xf32>
    %88 = arith.addf %86, %87 : vector<8x32xf32>
    %89 = math.tanh %88 : vector<8x32xf32>
    %90 = arith.mulf %85, %89 : vector<8x32xf32>
    %c24 = arith.constant 24 : index
    %c0_19 = arith.constant 0 : index
    %91 = vector.load %arg1[%c24, %c0_19] : memref<64x32xf32, #tpu.memory_space<vmem>>, vector<8x32xf32>
    %cst_20 = arith.constant 0.000000e+00 : f32
    %92 = vector.broadcast %cst_20 : f32 to vector<8x32xf32>
    %93 = arith.cmpf one, %91, %92 : vector<8x32xf32>
    %94 = arith.select %93, %88, %71 : vector<8x32xi1>, vector<8x32xf32>
    %95 = arith.select %93, %90, %72 : vector<8x32xi1>, vector<8x32xf32>
    %96 = vector.extract_strided_slice %1 {offsets = [32, 0], sizes = [8, 128], strides = [1, 1]} : vector<64x128xf32> to vector<8x128xf32>
    %cst_21 = arith.constant dense<0.000000e+00> : vector<8x128xf32>
    %97 = tpu.matmul %95, %0, %cst_21 {dimension_numbers = #tpu.dot_dimension_numbers<[1], [0], [0], [1], [0, 0, 1, 1], [], []>} : vector<8x32xf32>, vector<32x128xf32>, vector<8x128xf32> -> vector<8x128xf32>
    %98 = arith.addf %96, %97 : vector<8x128xf32>
    %99 = arith.negf %98 : vector<8x128xf32>
    %100 = math.exp %99 : vector<8x128xf32>
    %cst_22 = arith.constant 1.000000e+00 : f32
    %101 = vector.broadcast %cst_22 : f32 to vector<8x128xf32>
    %102 = arith.addf %101, %100 : vector<8x128xf32>
    %103 = arith.divf %101, %102 : vector<8x128xf32>
    %104 = math.tanh %98 : vector<8x128xf32>
    %105 = vector.extract_strided_slice %103 {offsets = [0, 0], sizes = [8, 32], strides = [1, 1]} : vector<8x128xf32> to vector<8x32xf32>
    %106 = vector.extract_strided_slice %103 {offsets = [0, 32], sizes = [8, 32], strides = [1, 1]} : vector<8x128xf32> to vector<8x32xf32>
    %107 = vector.extract_strided_slice %104 {offsets = [0, 64], sizes = [8, 32], strides = [1, 1]} : vector<8x128xf32> to vector<8x32xf32>
    %108 = vector.extract_strided_slice %103 {offsets = [0, 96], sizes = [8, 32], strides = [1, 1]} : vector<8x128xf32> to vector<8x32xf32>
    %109 = arith.mulf %106, %94 : vector<8x32xf32>
    %110 = arith.mulf %105, %107 : vector<8x32xf32>
    %111 = arith.addf %109, %110 : vector<8x32xf32>
    %112 = math.tanh %111 : vector<8x32xf32>
    %113 = arith.mulf %108, %112 : vector<8x32xf32>
    %c32 = arith.constant 32 : index
    %c0_23 = arith.constant 0 : index
    %114 = vector.load %arg1[%c32, %c0_23] : memref<64x32xf32, #tpu.memory_space<vmem>>, vector<8x32xf32>
    %cst_24 = arith.constant 0.000000e+00 : f32
    %115 = vector.broadcast %cst_24 : f32 to vector<8x32xf32>
    %116 = arith.cmpf one, %114, %115 : vector<8x32xf32>
    %117 = arith.select %116, %111, %94 : vector<8x32xi1>, vector<8x32xf32>
    %118 = arith.select %116, %113, %95 : vector<8x32xi1>, vector<8x32xf32>
    %119 = vector.extract_strided_slice %1 {offsets = [40, 0], sizes = [8, 128], strides = [1, 1]} : vector<64x128xf32> to vector<8x128xf32>
    %cst_25 = arith.constant dense<0.000000e+00> : vector<8x128xf32>
    %120 = tpu.matmul %118, %0, %cst_25 {dimension_numbers = #tpu.dot_dimension_numbers<[1], [0], [0], [1], [0, 0, 1, 1], [], []>} : vector<8x32xf32>, vector<32x128xf32>, vector<8x128xf32> -> vector<8x128xf32>
    %121 = arith.addf %119, %120 : vector<8x128xf32>
    %122 = arith.negf %121 : vector<8x128xf32>
    %123 = math.exp %122 : vector<8x128xf32>
    %cst_26 = arith.constant 1.000000e+00 : f32
    %124 = vector.broadcast %cst_26 : f32 to vector<8x128xf32>
    %125 = arith.addf %124, %123 : vector<8x128xf32>
    %126 = arith.divf %124, %125 : vector<8x128xf32>
    %127 = math.tanh %121 : vector<8x128xf32>
    %128 = vector.extract_strided_slice %126 {offsets = [0, 0], sizes = [8, 32], strides = [1, 1]} : vector<8x128xf32> to vector<8x32xf32>
    %129 = vector.extract_strided_slice %126 {offsets = [0, 32], sizes = [8, 32], strides = [1, 1]} : vector<8x128xf32> to vector<8x32xf32>
    %130 = vector.extract_strided_slice %127 {offsets = [0, 64], sizes = [8, 32], strides = [1, 1]} : vector<8x128xf32> to vector<8x32xf32>
    %131 = vector.extract_strided_slice %126 {offsets = [0, 96], sizes = [8, 32], strides = [1, 1]} : vector<8x128xf32> to vector<8x32xf32>
    %132 = arith.mulf %129, %117 : vector<8x32xf32>
    %133 = arith.mulf %128, %130 : vector<8x32xf32>
    %134 = arith.addf %132, %133 : vector<8x32xf32>
    %135 = math.tanh %134 : vector<8x32xf32>
    %136 = arith.mulf %131, %135 : vector<8x32xf32>
    %c40 = arith.constant 40 : index
    %c0_27 = arith.constant 0 : index
    %137 = vector.load %arg1[%c40, %c0_27] : memref<64x32xf32, #tpu.memory_space<vmem>>, vector<8x32xf32>
    %cst_28 = arith.constant 0.000000e+00 : f32
    %138 = vector.broadcast %cst_28 : f32 to vector<8x32xf32>
    %139 = arith.cmpf one, %137, %138 : vector<8x32xf32>
    %140 = arith.select %139, %134, %117 : vector<8x32xi1>, vector<8x32xf32>
    %141 = arith.select %139, %136, %118 : vector<8x32xi1>, vector<8x32xf32>
    %142 = vector.extract_strided_slice %1 {offsets = [48, 0], sizes = [8, 128], strides = [1, 1]} : vector<64x128xf32> to vector<8x128xf32>
    %cst_29 = arith.constant dense<0.000000e+00> : vector<8x128xf32>
    %143 = tpu.matmul %141, %0, %cst_29 {dimension_numbers = #tpu.dot_dimension_numbers<[1], [0], [0], [1], [0, 0, 1, 1], [], []>} : vector<8x32xf32>, vector<32x128xf32>, vector<8x128xf32> -> vector<8x128xf32>
    %144 = arith.addf %142, %143 : vector<8x128xf32>
    %145 = arith.negf %144 : vector<8x128xf32>
    %146 = math.exp %145 : vector<8x128xf32>
    %cst_30 = arith.constant 1.000000e+00 : f32
    %147 = vector.broadcast %cst_30 : f32 to vector<8x128xf32>
    %148 = arith.addf %147, %146 : vector<8x128xf32>
    %149 = arith.divf %147, %148 : vector<8x128xf32>
    %150 = math.tanh %144 : vector<8x128xf32>
    %151 = vector.extract_strided_slice %149 {offsets = [0, 0], sizes = [8, 32], strides = [1, 1]} : vector<8x128xf32> to vector<8x32xf32>
    %152 = vector.extract_strided_slice %149 {offsets = [0, 32], sizes = [8, 32], strides = [1, 1]} : vector<8x128xf32> to vector<8x32xf32>
    %153 = vector.extract_strided_slice %150 {offsets = [0, 64], sizes = [8, 32], strides = [1, 1]} : vector<8x128xf32> to vector<8x32xf32>
    %154 = vector.extract_strided_slice %149 {offsets = [0, 96], sizes = [8, 32], strides = [1, 1]} : vector<8x128xf32> to vector<8x32xf32>
    %155 = arith.mulf %152, %140 : vector<8x32xf32>
    %156 = arith.mulf %151, %153 : vector<8x32xf32>
    %157 = arith.addf %155, %156 : vector<8x32xf32>
    %158 = math.tanh %157 : vector<8x32xf32>
    %159 = arith.mulf %154, %158 : vector<8x32xf32>
    %c48 = arith.constant 48 : index
    %c0_31 = arith.constant 0 : index
    %160 = vector.load %arg1[%c48, %c0_31] : memref<64x32xf32, #tpu.memory_space<vmem>>, vector<8x32xf32>
    %cst_32 = arith.constant 0.000000e+00 : f32
    %161 = vector.broadcast %cst_32 : f32 to vector<8x32xf32>
    %162 = arith.cmpf one, %160, %161 : vector<8x32xf32>
    %163 = arith.select %162, %157, %140 : vector<8x32xi1>, vector<8x32xf32>
    %164 = arith.select %162, %159, %141 : vector<8x32xi1>, vector<8x32xf32>
    %165 = vector.extract_strided_slice %1 {offsets = [56, 0], sizes = [8, 128], strides = [1, 1]} : vector<64x128xf32> to vector<8x128xf32>
    %cst_33 = arith.constant dense<0.000000e+00> : vector<8x128xf32>
    %166 = tpu.matmul %164, %0, %cst_33 {dimension_numbers = #tpu.dot_dimension_numbers<[1], [0], [0], [1], [0, 0, 1, 1], [], []>} : vector<8x32xf32>, vector<32x128xf32>, vector<8x128xf32> -> vector<8x128xf32>
    %167 = arith.addf %165, %166 : vector<8x128xf32>
    %168 = arith.negf %167 : vector<8x128xf32>
    %169 = math.exp %168 : vector<8x128xf32>
    %cst_34 = arith.constant 1.000000e+00 : f32
    %170 = vector.broadcast %cst_34 : f32 to vector<8x128xf32>
    %171 = arith.addf %170, %169 : vector<8x128xf32>
    %172 = arith.divf %170, %171 : vector<8x128xf32>
    %173 = math.tanh %167 : vector<8x128xf32>
    %174 = vector.extract_strided_slice %172 {offsets = [0, 0], sizes = [8, 32], strides = [1, 1]} : vector<8x128xf32> to vector<8x32xf32>
    %175 = vector.extract_strided_slice %172 {offsets = [0, 32], sizes = [8, 32], strides = [1, 1]} : vector<8x128xf32> to vector<8x32xf32>
    %176 = vector.extract_strided_slice %173 {offsets = [0, 64], sizes = [8, 32], strides = [1, 1]} : vector<8x128xf32> to vector<8x32xf32>
    %177 = vector.extract_strided_slice %172 {offsets = [0, 96], sizes = [8, 32], strides = [1, 1]} : vector<8x128xf32> to vector<8x32xf32>
    %178 = arith.mulf %175, %163 : vector<8x32xf32>
    %179 = arith.mulf %174, %176 : vector<8x32xf32>
    %180 = arith.addf %178, %179 : vector<8x32xf32>
    %181 = math.tanh %180 : vector<8x32xf32>
    %182 = arith.mulf %177, %181 : vector<8x32xf32>
    %c56 = arith.constant 56 : index
    %c0_35 = arith.constant 0 : index
    %183 = vector.load %arg1[%c56, %c0_35] : memref<64x32xf32, #tpu.memory_space<vmem>>, vector<8x32xf32>
    %cst_36 = arith.constant 0.000000e+00 : f32
    %184 = vector.broadcast %cst_36 : f32 to vector<8x32xf32>
    %185 = arith.cmpf one, %183, %184 : vector<8x32xf32>
    %186 = arith.select %185, %182, %164 : vector<8x32xi1>, vector<8x32xf32>
    %c0_37 = arith.constant 0 : index
    %c0_38 = arith.constant 0 : index
    %187 = vector.load %arg3[%c0_37, %c0_38] : memref<32x128xf32, #tpu.memory_space<vmem>>, vector<32x128xf32>
    %cst_39 = arith.constant dense<0.000000e+00> : vector<8x128xf32>
    %188 = tpu.matmul %186, %187, %cst_39 {dimension_numbers = #tpu.dot_dimension_numbers<[1], [0], [0], [1], [0, 0, 1, 1], [], []>} : vector<8x32xf32>, vector<32x128xf32>, vector<8x128xf32> -> vector<8x128xf32>
    %c0_40 = arith.constant 0 : index
    %c0_41 = arith.constant 0 : index
    %189 = vector.load %arg4[%c0_40, %c0_41] : memref<1x128xf32, #tpu.memory_space<vmem>>, vector<1x128xf32>
    %190 = vector.broadcast %189 : vector<1x128xf32> to vector<8x128xf32>
    %191 = arith.addf %188, %190 : vector<8x128xf32>
    %c0_42 = arith.constant 0 : index
    %c0_43 = arith.constant 0 : index
    %192 = vector.load %arg5[%c0_42, %c0_43] : memref<8x128xf32, #tpu.memory_space<vmem>>, vector<8x128xf32>
    tpu.vector_store %arg5[%c0_42, %c0_43], %191 {strides = array<i32>} : memref<8x128xf32, #tpu.memory_space<vmem>>, vector<8x128xf32>,
    return
  }
}

</mosaic_0001>

<llo_original>
// kernel: sentiment_lstm_forward.1
$region0: #{sentiment_lstm_forward.1}
  #allocation0 [shape = 'u32[]', space=smem, size = 0x4, offset = 0x4, fixed_abs, tag = 'smem constant byte address 0x4 - core index']
  #allocation1 [shape = 'u32[144,128]{1,0:T(1,128)}', space=vmem, size = 0x12000, scoped, tag = 'internal scratch']
  %s0 = inlined_call_operand.vmem [shape: f32[64,128], index: 0, kind: input, shape index: {}]
  %s1 = inlined_call_operand.vmem [shape: f32[64,32], index: 1, kind: input, shape index: {}]
  %s2 = inlined_call_operand.vmem [shape: f32[32,128], index: 2, kind: input, shape index: {}]
  %s3 = inlined_call_operand.vmem [shape: f32[32,128], index: 3, kind: input, shape index: {}]
  %s4 = inlined_call_operand.vmem [shape: f32[1,128], index: 4, kind: input, shape index: {}]
  %s5 = inlined_call_operand.vmem [shape: f32[8,128], index: 5, kind: output, shape index: {}]
  %s6 = sld [smem:[#allocation0]]
  $region30: #{sentiment_lstm_forward.1} parent=0
    _
  %s8 = ssub.s32 1, %s6
  %s9 = scalar_select 0, %s8, %s6
  // Predicated region
  $region2: #{sentiment_lstm_forward.1} parent=0 // pred_check
    _
  $region3: #{sentiment_lstm_forward.1} parent=0 // pred_check_branch
    %11 = sbr.rel (0) target = $region5
  $region4: #{sentiment_lstm_forward.1} parent=0 // pred_region
    _
  $region5: #{sentiment_lstm_forward.1} parent=0 // pred_fallthru
    _
  // Predicated region
  $region6: #{sentiment_lstm_forward.1} parent=0 // pred_check
    _
  $region7: #{sentiment_lstm_forward.1} parent=0 // pred_check_branch
    %13 = sbr.rel (0) target = $region9
  $region8: #{sentiment_lstm_forward.1} parent=0 // pred_region
    _
  $region9: #{sentiment_lstm_forward.1} parent=0 // pred_fallthru
    _
  // Predicated region
  $region10: #{sentiment_lstm_forward.1} parent=0 // pred_check
    _
  $region11: #{sentiment_lstm_forward.1} parent=0 // pred_check_branch
    %15 = sbr.rel (0) target = $region13
  $region12: #{sentiment_lstm_forward.1} parent=0 // pred_region
    _
  $region13: #{sentiment_lstm_forward.1} parent=0 // pred_fallthru
    _
  // Predicated region
  $region14: #{sentiment_lstm_forward.1} parent=0 // pred_check
    _
  $region15: #{sentiment_lstm_forward.1} parent=0 // pred_check_branch
    %17 = sbr.rel (0) target = $region17
  $region16: #{sentiment_lstm_forward.1} parent=0 // pred_region
    _
  $region17: #{sentiment_lstm_forward.1} parent=0 // pred_fallthru
    _
  // Predicated region
  $region18: #{sentiment_lstm_forward.1} parent=0 // pred_check
    _
  $region19: #{sentiment_lstm_forward.1} parent=0 // pred_check_branch
    %19 = sbr.rel (0) target = $region21
  $region20: #{sentiment_lstm_forward.1} parent=0 // pred_region
    _
  $region21: #{sentiment_lstm_forward.1} parent=0 // pred_fallthru
    _
  %v20 = vld [vmem:[%s2] sm:$0xff]
  %v21 = vld [vmem:[%s2 + $0x8] sm:$0xff]
  %v22 = vld [vmem:[%s2 + $0x10] sm:$0xff]
  %v23 = vld [vmem:[%s2 + $0x18] sm:$0xff]
  %v24 = vld [vmem:[%s0] sm:$0xff]
  %v25 = vld [vmem:[%s0 + $0x8] sm:$0xff]
  %v26 = vld [vmem:[%s0 + $0x10] sm:$0xff]
  %v27 = vld [vmem:[%s0 + $0x18] sm:$0xff]
  %v28 = vld [vmem:[%s0 + $0x20] sm:$0xff]
  %v29 = vld [vmem:[%s0 + $0x28] sm:$0xff]
  %v30 = vld [vmem:[%s0 + $0x30] sm:$0xff]
  %v31 = vld [vmem:[%s0 + $0x38] sm:$0xff]
  %vm32 = vcmask 261120
  %v34 = vsel %vm32, 0.0, 0
  %36 = vmatprep.subr.mxu0 0.0
  %37 = vmatpush1.msra.mxu0 %v20
  %38 = vmatprep.subr.mxu0 0.0
  %39 = vmatpush1.msra.mxu0 %v21
  %40 = vmatprep.subr.mxu0 0.0
  %41 = vmatpush1.msra.mxu0 %v22
  %42 = vmatprep.subr.mxu0 0.0
  %43 = vmatpush1.msra.mxu0 %v23
  %44 = vmatprep.subr.mxu0 0.0
  %45 = vmatpush1.msra.mxu0 0.0
  %46 = vmatprep.subr.mxu0 0.0
  %47 = vmatpush1.msra.mxu0 0.0
  %48 = vmatprep.subr.mxu0 0.0
  %49 = vmatpush1.msra.mxu0 0.0
  %50 = vmatprep.subr.mxu0 0.0
  %51 = vmatpush1.msra.mxu0 0.0
  %52 = vmatprep.subr.mxu0 0.0
  %53 = vmatpush1.msra.mxu0 0.0
  %54 = vmatprep.subr.mxu0 0.0
  %55 = vmatpush1.msra.mxu0 0.0
  %56 = vmatprep.subr.mxu0 0.0
  %57 = vmatpush1.msra.mxu0 0.0
  %58 = vmatprep.subr.mxu0 0.0
  %59 = vmatpush1.msra.mxu0 0.0
  %60 = vmatprep.subr.mxu0 0.0
  %61 = vmatpush1.msra.mxu0 0.0
  %62 = vmatprep.subr.mxu0 0.0
  %63 = vmatpush1.msra.mxu0 0.0
  %64 = vmatprep.subr.mxu0 0.0
  %65 = vmatpush1.msra.mxu0 0.0
  %66 = vmatprep.subr.mxu0 0.0
  %67 = vmatpush1.msra.mxu0 0.0
  %68 = vmatprep.subr.mxu0 0.0
  %69 = vmatpush1.msra.mxu0 0.0
  %70 = vmatprep.subr.mxu0 0.0
  %71 = vmatpush1.msra.mxu0 0.0
  %72 = vmatprep.subr.mxu0 0.0
  %73 = vmatpush1.msra.mxu0 0.0
  %74 = vmatprep.subr.mxu0 0.0
  %75 = vmatpush1.msra.mxu0 0.0
  %76 = vmatprep.subr.mxu0 0.0
  %77 = vmatpush1.msra.mxu0 0.0
  %78 = vmatprep.subr.mxu0 0.0
  %79 = vmatpush1.msra.mxu0 0.0
  %80 = vmatprep.subr.mxu0 0.0
  %81 = vmatpush1.msra.mxu0 0.0
  %82 = vmatprep.subr.mxu0 0.0
  %83 = vmatpush1.msra.mxu0 0.0
  %84 = vmatprep.subr.mxu0 0.0
  %85 = vmatpush1.msra.mxu0 0.0
  %86 = vmatprep.subr.mxu0 0.0
  %87 = vmatpush1.msra.mxu0 0.0
  %88 = vmatprep.subr.mxu0 0.0
  %89 = vmatpush1.msra.mxu0 0.0
  %90 = vmatprep.subr.mxu0 0.0
  %91 = vmatpush1.msra.mxu0 0.0
  %92 = vmatprep.subr.mxu0 0.0
  %93 = vmatpush1.msra.mxu0 0.0
  %94 = vmatprep.subr.mxu0 0.0
  %95 = vmatpush1.msra.mxu0 0.0
  %96 = vmatprep.subr.mxu0 0.0
  %97 = vmatpush1.msra.mxu0 0.0
  %98 = vmatprep.subr.mxu0 0.0
  %99 = vmatpush1.msra.mxu0 0.0
  %100 = vmatprep.mubr.f32.mxu0 0.0
  %101 = vmatmul.mubr.f32.gmra.mrb[0].mxu0 %v34
  %v102 = vpop.f32.mrb[0].mxu0
  %v103 = vadd.f32 0.0, %v102
  %v104 = vpop.f32.mrb[0].mxu0
  %105 = vdwg.mxu0
  %v106 = vadd.f32 %v24, %v103
  %v107 = vxor.u32 %v106, 2147483648
  %v108 = vmul.f32 %v107, 1.442695
  %v109 = vpow.pop %v108
  %v110 = vadd.f32 %v109, 1.0
  %v111 = vrcp.pop %v110
  %v112 = vmul.f32 1.0, %v111
  %v113 = vtanh.pop %v106
  %v114 = vmul.f32 %v112, 0.0
  %116 = vrot.lane.b32.xlu0 %v113, 64
  %v117 = vpop.permute.xlu0 %116
  %v119 = vmul.f32 %v112, %v117
  %121 = vrot.lane.b32.xlu0 %v119, 32
  %v122 = vpop.permute.xlu0 %121
  %v124 = vadd.f32 %v114, %v122
  %v125 = vtanh.pop %v124
  %127 = vrot.lane.b32.xlu0 %v125, 64
  %v128 = vpop.permute.xlu0 %127
  %v130 = vmul.f32 %v112, %v128
  %v131 = vld [vmem:[%s1] sm:$0xff]
  %vm132 = vcmp.ne.f32.partialorder %v131, 0.0
  %134 = vrot.lane.b32.xlu0 %v124, 96
  %v135 = vpop.permute.xlu0 %134
  %v137 = vsel %vm132, %v135, 0.0
  %139 = vrot.lane.b32.xlu0 %v130, 32
  %v140 = vpop.permute.xlu0 %139
  %v142 = vsel %vm132, %v140, 0.0
  %v144 = vsel %vm32, %v142, 0
  %146 = vmatprep.subr.mxu0 0.0
  %147 = vmatpush1.msra.mxu0 %v20
  %148 = vmatprep.subr.mxu0 0.0
  %149 = vmatpush1.msra.mxu0 %v21
  %150 = vmatprep.subr.mxu0 0.0
  %151 = vmatpush1.msra.mxu0 %v22
  %152 = vmatprep.subr.mxu0 0.0
  %153 = vmatpush1.msra.mxu0 %v23
  %154 = vmatprep.subr.mxu0 0.0
  %155 = vmatpush1.msra.mxu0 0.0
  %156 = vmatprep.subr.mxu0 0.0
  %157 = vmatpush1.msra.mxu0 0.0
  %158 = vmatprep.subr.mxu0 0.0
  %159 = vmatpush1.msra.mxu0 0.0
  %160 = vmatprep.subr.mxu0 0.0
  %161 = vmatpush1.msra.mxu0 0.0
  %162 = vmatprep.subr.mxu0 0.0
  %163 = vmatpush1.msra.mxu0 0.0
  %164 = vmatprep.subr.mxu0 0.0
  %165 = vmatpush1.msra.mxu0 0.0
  %166 = vmatprep.subr.mxu0 0.0
  %167 = vmatpush1.msra.mxu0 0.0
  %168 = vmatprep.subr.mxu0 0.0
  %169 = vmatpush1.msra.mxu0 0.0
  %170 = vmatprep.subr.mxu0 0.0
  %171 = vmatpush1.msra.mxu0 0.0
  %172 = vmatprep.subr.mxu0 0.0
  %173 = vmatpush1.msra.mxu0 0.0
  %174 = vmatprep.subr.mxu0 0.0
  %175 = vmatpush1.msra.mxu0 0.0
  %176 = vmatprep.subr.mxu0 0.0
  %177 = vmatpush1.msra.mxu0 0.0
  %178 = vmatprep.subr.mxu0 0.0
  %179 = vmatpush1.msra.mxu0 0.0
  %180 = vmatprep.subr.mxu0 0.0
  %181 = vmatpush1.msra.mxu0 0.0
  %182 = vmatprep.subr.mxu0 0.0
  %183 = vmatpush1.msra.mxu0 0.0
  %184 = vmatprep.subr.mxu0 0.0
  %185 = vmatpush1.msra.mxu0 0.0
  %186 = vmatprep.subr.mxu0 0.0
  %187 = vmatpush1.msra.mxu0 0.0
  %188 = vmatprep.subr.mxu0 0.0
  %189 = vmatpush1.msra.mxu0 0.0
  %190 = vmatprep.subr.mxu0 0.0
  %191 = vmatpush1.msra.mxu0 0.0
  %192 = vmatprep.subr.mxu0 0.0
  %193 = vmatpush1.msra.mxu0 0.0
  %194 = vmatprep.subr.mxu0 0.0
  %195 = vmatpush1.msra.mxu0 0.0
  %196 = vmatprep.subr.mxu0 0.0
  %197 = vmatpush1.msra.mxu0 0.0
  %198 = vmatprep.subr.mxu0 0.0
  %199 = vmatpush1.msra.mxu0 0.0
  %200 = vmatprep.subr.mxu0 0.0
  %201 = vmatpush1.msra.mxu0 0.0
  %202 = vmatprep.subr.mxu0 0.0
  %203 = vmatpush1.msra.mxu0 0.0
  %204 = vmatprep.subr.mxu0 0.0
  %205 = vmatpush1.msra.mxu0 0.0
  %206 = vmatprep.subr.mxu0 0.0
  %207 = vmatpush1.msra.mxu0 0.0
  %208 = vmatprep.subr.mxu0 0.0
  %209 = vmatpush1.msra.mxu0 0.0
  %210 = vmatprep.mubr.f32.mxu0 0.0
  %211 = vmatmul.mubr.f32.gmra.mrb[0].mxu0 %v144
  %v212 = vpop.f32.mrb[0].mxu0
  %v213 = vadd.f32 0.0, %v212
  %v214 = vpop.f32.mrb[0].mxu0
  %215 = vdwg.mxu0
  %v216 = vadd.f32 %v25, %v213
  %v217 = vxor.u32 %v216, 2147483648
  %v218 = vmul.f32 %v217, 1.442695
  %v219 = vpow.pop %v218
  %v220 = vadd.f32 %v219, 1.0
  %v221 = vrcp.pop %v220
  %v222 = vmul.f32 1.0, %v221
  %v223 = vtanh.pop %v216
  %225 = vrot.lane.b32.xlu0 %v137, 32
  %v226 = vpop.permute.xlu0 %225
  %v228 = vmul.f32 %v222, %v226
  %230 = vrot.lane.b32.xlu0 %v223, 64
  %v231 = vpop.permute.xlu0 %230
  %v233 = vmul.f32 %v222, %v231
  %235 = vrot.lane.b32.xlu0 %v233, 32
  %v236 = vpop.permute.xlu0 %235
  %v238 = vadd.f32 %v228, %v236
  %v239 = vtanh.pop %v238
  %241 = vrot.lane.b32.xlu0 %v239, 64
  %v242 = vpop.permute.xlu0 %241
  %v244 = vmul.f32 %v222, %v242
  %v245 = vld [vmem:[%s1 + $0x8] sm:$0xff]
  %vm246 = vcmp.ne.f32.partialorder %v245, 0.0
  %248 = vrot.lane.b32.xlu0 %v238, 96
  %v249 = vpop.permute.xlu0 %248
  %v251 = vsel %vm246, %v249, %v137
  %253 = vrot.lane.b32.xlu0 %v244, 32
  %v254 = vpop.permute.xlu0 %253
  %v256 = vsel %vm246, %v254, %v142
  %v258 = vsel %vm32, %v256, 0
  %260 = vmatprep.subr.mxu0 0.0
  %261 = vmatpush1.msra.mxu0 %v20
  %262 = vmatprep.subr.mxu0 0.0
  %263 = vmatpush1.msra.mxu0 %v21
  %264 = vmatprep.subr.mxu0 0.0
  %265 = vmatpush1.msra.mxu0 %v22
  %266 = vmatprep.subr.mxu0 0.0
  %267 = vmatpush1.msra.mxu0 %v23
  %268 = vmatprep.subr.mxu0 0.0
  %269 = vmatpush1.msra.mxu0 0.0
  %270 = vmatprep.subr.mxu0 0.0
  %271 = vmatpush1.msra.mxu0 0.0
  %272 = vmatprep.subr.mxu0 0.0
  %273 = vmatpush1.msra.mxu0 0.0
  %274 = vmatprep.subr.mxu0 0.0
  %275 = vmatpush1.msra.mxu0 0.0
  %276 = vmatprep.subr.mxu0 0.0
  %277 = vmatpush1.msra.mxu0 0.0
  %278 = vmatprep.subr.mxu0 0.0
  %279 = vmatpush1.msra.mxu0 0.0
  %280 = vmatprep.subr.mxu0 0.0
  %281 = vmatpush1.msra.mxu0 0.0
  %282 = vmatprep.subr.mxu0 0.0
  %283 = vmatpush1.msra.mxu0 0.0
  %284 = vmatprep.subr.mxu0 0.0
  %285 = vmatpush1.msra.mxu0 0.0
  %286 = vmatprep.subr.mxu0 0.0
  %287 = vmatpush1.msra.mxu0 0.0
  %288 = vmatprep.subr.mxu0 0.0
  %289 = vmatpush1.msra.mxu0 0.0
  %290 = vmatprep.subr.mxu0 0.0
  %291 = vmatpush1.msra.mxu0 0.0
  %292 = vmatprep.subr.mxu0 0.0
  %293 = vmatpush1.msra.mxu0 0.0
  %294 = vmatprep.subr.mxu0 0.0
  %295 = vmatpush1.msra.mxu0 0.0
  %296 = vmatprep.subr.mxu0 0.0
  %297 = vmatpush1.msra.mxu0 0.0
  %298 = vmatprep.subr.mxu0 0.0
  %299 = vmatpush1.msra.mxu0 0.0
  %300 = vmatprep.subr.mxu0 0.0
  %301 = vmatpush1.msra.mxu0 0.0
  %302 = vmatprep.subr.mxu0 0.0
  %303 = vmatpush1.msra.mxu0 0.0
  %304 = vmatprep.subr.mxu0 0.0
  %305 = vmatpush1.msra.mxu0 0.0
  %306 = vmatprep.subr.mxu0 0.0
  %307 = vmatpush1.msra.mxu0 0.0
  %308 = vmatprep.subr.mxu0 0.0
  %309 = vmatpush1.msra.mxu0 0.0
  %310 = vmatprep.subr.mxu0 0.0
  %311 = vmatpush1.msra.mxu0 0.0
  %312 = vmatprep.subr.mxu0 0.0
  %313 = vmatpush1.msra.mxu0 0.0
  %314 = vmatprep.subr.mxu0 0.0
  %315 = vmatpush1.msra.mxu0 0.0
  %316 = vmatprep.subr.mxu0 0.0
  %317 = vmatpush1.msra.mxu0 0.0
  %318 = vmatprep.subr.mxu0 0.0
  %319 = vmatpush1.msra.mxu0 0.0
  %320 = vmatprep.subr.mxu0 0.0
  %321 = vmatpush1.msra.mxu0 0.0
  %322 = vmatprep.subr.mxu0 0.0
  %323 = vmatpush1.msra.mxu0 0.0
  %324 = vmatprep.mubr.f32.mxu0 0.0
  %325 = vmatmul.mubr.f32.gmra.mrb[0].mxu0 %v258
  %v326 = vpop.f32.mrb[0].mxu0
  %v327 = vadd.f32 0.0, %v326
  %v328 = vpop.f32.mrb[0].mxu0
  %329 = vdwg.mxu0
  %v330 = vadd.f32 %v26, %v327
  %v331 = vxor.u32 %v330, 2147483648
  %v332 = vmul.f32 %v331, 1.442695
  %v333 = vpow.pop %v332
  %v334 = vadd.f32 %v333, 1.0
  %v335 = vrcp.pop %v334
  %v336 = vmul.f32 1.0, %v335
  %v337 = vtanh.pop %v330
  %339 = vrot.lane.b32.xlu0 %v251, 32
  %v340 = vpop.permute.xlu0 %339
  %v342 = vmul.f32 %v336, %v340
  %344 = vrot.lane.b32.xlu0 %v337, 64
  %v345 = vpop.permute.xlu0 %344
  %v347 = vmul.f32 %v336, %v345
  %349 = vrot.lane.b32.xlu0 %v347, 32
  %v350 = vpop.permute.xlu0 %349
  %v352 = vadd.f32 %v342, %v350
  %v353 = vtanh.pop %v352
  %355 = vrot.lane.b32.xlu0 %v353, 64
  %v356 = vpop.permute.xlu0 %355
  %v358 = vmul.f32 %v336, %v356
  %v359 = vld [vmem:[%s1 + $0x10] sm:$0xff]
  %vm360 = vcmp.ne.f32.partialorder %v359, 0.0
  %362 = vrot.lane.b32.xlu0 %v352, 96
  %v363 = vpop.permute.xlu0 %362
  %v365 = vsel %vm360, %v363, %v251
  %367 = vrot.lane.b32.xlu0 %v358, 32
  %v368 = vpop.permute.xlu0 %367
  %v370 = vsel %vm360, %v368, %v256
  %v372 = vsel %vm32, %v370, 0
  %374 = vmatprep.subr.mxu0 0.0
  %375 = vmatpush1.msra.mxu0 %v20
  %376 = vmatprep.subr.mxu0 0.0
  %377 = vmatpush1.msra.mxu0 %v21
  %378 = vmatprep.subr.mxu0 0.0
  %379 = vmatpush1.msra.mxu0 %v22
  %380 = vmatprep.subr.mxu0 0.0
  %381 = vmatpush1.msra.mxu0 %v23
  %382 = vmatprep.subr.mxu0 0.0
  %383 = vmatpush1.msra.mxu0 0.0
  %384 = vmatprep.subr.mxu0 0.0
  %385 = vmatpush1.msra.mxu0 0.0
  %386 = vmatprep.subr.mxu0 0.0
  %387 = vmatpush1.msra.mxu0 0.0
  %388 = vmatprep.subr.mxu0 0.0
  %389 = vmatpush1.msra.mxu0 0.0
  %390 = vmatprep.subr.mxu0 0.0
  %391 = vmatpush1.msra.mxu0 0.0
  %392 = vmatprep.subr.mxu0 0.0
  %393 = vmatpush1.msra.mxu0 0.0
  %394 = vmatprep.subr.mxu0 0.0
  %395 = vmatpush1.msra.mxu0 0.0
  %396 = vmatprep.subr.mxu0 0.0
  %397 = vmatpush1.msra.mxu0 0.0
  %398 = vmatprep.subr.mxu0 0.0
  %399 = vmatpush1.msra.mxu0 0.0
  %400 = vmatprep.subr.mxu0 0.0
  %401 = vmatpush1.msra.mxu0 0.0
  %402 = vmatprep.subr.mxu0 0.0
  %403 = vmatpush1.msra.mxu0 0.0
  %404 = vmatprep.subr.mxu0 0.0
  %405 = vmatpush1.msra.mxu0 0.0
  %406 = vmatprep.subr.mxu0 0.0
  %407 = vmatpush1.msra.mxu0 0.0
  %408 = vmatprep.subr.mxu0 0.0
  %409 = vmatpush1.msra.mxu0 0.0
  %410 = vmatprep.subr.mxu0 0.0
  %411 = vmatpush1.msra.mxu0 0.0
  %412 = vmatprep.subr.mxu0 0.0
  %413 = vmatpush1.msra.mxu0 0.0
  %414 = vmatprep.subr.mxu0 0.0
  %415 = vmatpush1.msra.mxu0 0.0
  %416 = vmatprep.subr.mxu0 0.0
  %417 = vmatpush1.msra.mxu0 0.0
  %418 = vmatprep.subr.mxu0 0.0
  %419 = vmatpush1.msra.mxu0 0.0
  %420 = vmatprep.subr.mxu0 0.0
  %421 = vmatpush1.msra.mxu0 0.0
  %422 = vmatprep.subr.mxu0 0.0
  %423 = vmatpush1.msra.mxu0 0.0
  %424 = vmatprep.subr.mxu0 0.0
  %425 = vmatpush1.msra.mxu0 0.0
  %426 = vmatprep.subr.mxu0 0.0
  %427 = vmatpush1.msra.mxu0 0.0
  %428 = vmatprep.subr.mxu0 0.0
  %429 = vmatpush1.msra.mxu0 0.0
  %430 = vmatprep.subr.mxu0 0.0
  %431 = vmatpush1.msra.mxu0 0.0
  %432 = vmatprep.subr.mxu0 0.0
  %433 = vmatpush1.msra.mxu0 0.0
  %434 = vmatprep.subr.mxu0 0.0
  %435 = vmatpush1.msra.mxu0 0.0
  %436 = vmatprep.subr.mxu0 0.0
  %437 = vmatpush1.msra.mxu0 0.0
  %438 = vmatprep.mubr.f32.mxu0 0.0
  %439 = vmatmul.mubr.f32.gmra.mrb[0].mxu0 %v372
  %v440 = vpop.f32.mrb[0].mxu0
  %v441 = vadd.f32 0.0, %v440
  %v442 = vpop.f32.mrb[0].mxu0
  %443 = vdwg.mxu0
  %v444 = vadd.f32 %v27, %v441
  %v445 = vxor.u32 %v444, 2147483648
  %v446 = vmul.f32 %v445, 1.442695
  %v447 = vpow.pop %v446
  %v448 = vadd.f32 %v447, 1.0
  %v449 = vrcp.pop %v448
  %v450 = vmul.f32 1.0, %v449
  %v451 = vtanh.pop %v444
  %453 = vrot.lane.b32.xlu0 %v365, 32
  %v454 = vpop.permute.xlu0 %453
  %v456 = vmul.f32 %v450, %v454
  %458 = vrot.lane.b32.xlu0 %v451, 64
  %v459 = vpop.permute.xlu0 %458
  %v461 = vmul.f32 %v450, %v459
  %463 = vrot.lane.b32.xlu0 %v461, 32
  %v464 = vpop.permute.xlu0 %463
  %v466 = vadd.f32 %v456, %v464
  %v467 = vtanh.pop %v466
  %469 = vrot.lane.b32.xlu0 %v467, 64
  %v470 = vpop.permute.xlu0 %469
  %v472 = vmul.f32 %v450, %v470
  %v473 = vld [vmem:[%s1 + $0x18] sm:$0xff]
  %vm474 = vcmp.ne.f32.partialorder %v473, 0.0
  %476 = vrot.lane.b32.xlu0 %v466, 96
  %v477 = vpop.permute.xlu0 %476
  %v479 = vsel %vm474, %v477, %v365
  %481 = vrot.lane.b32.xlu0 %v472, 32
  %v482 = vpop.permute.xlu0 %481
  %v484 = vsel %vm474, %v482, %v370
  %v486 = vsel %vm32, %v484, 0
  %488 = vmatprep.subr.mxu0 0.0
  %489 = vmatpush1.msra.mxu0 %v20
  %490 = vmatprep.subr.mxu0 0.0
  %491 = vmatpush1.msra.mxu0 %v21
  %492 = vmatprep.subr.mxu0 0.0
  %493 = vmatpush1.msra.mxu0 %v22
  %494 = vmatprep.subr.mxu0 0.0
  %495 = vmatpush1.msra.mxu0 %v23
  %496 = vmatprep.subr.mxu0 0.0
  %497 = vmatpush1.msra.mxu0 0.0
  %498 = vmatprep.subr.mxu0 0.0
  %499 = vmatpush1.msra.mxu0 0.0
  %500 = vmatprep.subr.mxu0 0.0
  %501 = vmatpush1.msra.mxu0 0.0
  %502 = vmatprep.subr.mxu0 0.0
  %503 = vmatpush1.msra.mxu0 0.0
  %504 = vmatprep.subr.mxu0 0.0
  %505 = vmatpush1.msra.mxu0 0.0
  %506 = vmatprep.subr.mxu0 0.0
  %507 = vmatpush1.msra.mxu0 0.0
  %508 = vmatprep.subr.mxu0 0.0
  %509 = vmatpush1.msra.mxu0 0.0
  %510 = vmatprep.subr.mxu0 0.0
  %511 = vmatpush1.msra.mxu0 0.0
  %512 = vmatprep.subr.mxu0 0.0
  %513 = vmatpush1.msra.mxu0 0.0
  %514 = vmatprep.subr.mxu0 0.0
  %515 = vmatpush1.msra.mxu0 0.0
  %516 = vmatprep.subr.mxu0 0.0
  %517 = vmatpush1.msra.mxu0 0.0
  %518 = vmatprep.subr.mxu0 0.0
  %519 = vmatpush1.msra.mxu0 0.0
  %520 = vmatprep.subr.mxu0 0.0
  %521 = vmatpush1.msra.mxu0 0.0
  %522 = vmatprep.subr.mxu0 0.0
  %523 = vmatpush1.msra.mxu0 0.0
  %524 = vmatprep.subr.mxu0 0.0
  %525 = vmatpush1.msra.mxu0 0.0
  %526 = vmatprep.subr.mxu0 0.0
  %527 = vmatpush1.msra.mxu0 0.0
  %528 = vmatprep.subr.mxu0 0.0
  %529 = vmatpush1.msra.mxu0 0.0
  %530 = vmatprep.subr.mxu0 0.0
  %531 = vmatpush1.msra.mxu0 0.0
  %532 = vmatprep.subr.mxu0 0.0
  %533 = vmatpush1.msra.mxu0 0.0
  %534 = vmatprep.subr.mxu0 0.0
  %535 = vmatpush1.msra.mxu0 0.0
  %536 = vmatprep.subr.mxu0 0.0
  %537 = vmatpush1.msra.mxu0 0.0
  %538 = vmatprep.subr.mxu0 0.0
  %539 = vmatpush1.msra.mxu0 0.0
  %540 = vmatprep.subr.mxu0 0.0
  %541 = vmatpush1.msra.mxu0 0.0
  %542 = vmatprep.subr.mxu0 0.0
  %543 = vmatpush1.msra.mxu0 0.0
  %544 = vmatprep.subr.mxu0 0.0
  %545 = vmatpush1.msra.mxu0 0.0
  %546 = vmatprep.subr.mxu0 0.0
  %547 = vmatpush1.msra.mxu0 0.0
  %548 = vmatprep.subr.mxu0 0.0
  %549 = vmatpush1.msra.mxu0 0.0
  %550 = vmatprep.subr.mxu0 0.0
  %551 = vmatpush1.msra.mxu0 0.0
  %552 = vmatprep.mubr.f32.mxu0 0.0
  %553 = vmatmul.mubr.f32.gmra.mrb[0].mxu0 %v486
  %v554 = vpop.f32.mrb[0].mxu0
  %v555 = vadd.f32 0.0, %v554
  %v556 = vpop.f32.mrb[0].mxu0
  %557 = vdwg.mxu0
  %v558 = vadd.f32 %v28, %v555
  %v559 = vxor.u32 %v558, 2147483648
  %v560 = vmul.f32 %v559, 1.442695
  %v561 = vpow.pop %v560
  %v562 = vadd.f32 %v561, 1.0
  %v563 = vrcp.pop %v562
  %v564 = vmul.f32 1.0, %v563
  %v565 = vtanh.pop %v558
  %567 = vrot.lane.b32.xlu0 %v479, 32
  %v568 = vpop.permute.xlu0 %567
  %v570 = vmul.f32 %v564, %v568
  %572 = vrot.lane.b32.xlu0 %v565, 64
  %v573 = vpop.permute.xlu0 %572
  %v575 = vmul.f32 %v564, %v573
  %577 = vrot.lane.b32.xlu0 %v575, 32
  %v578 = vpop.permute.xlu0 %577
  %v580 = vadd.f32 %v570, %v578
  %v581 = vtanh.pop %v580
  %583 = vrot.lane.b32.xlu0 %v581, 64
  %v584 = vpop.permute.xlu0 %583
  %v586 = vmul.f32 %v564, %v584
  %v587 = vld [vmem:[%s1 + $0x20] sm:$0xff]
  %vm588 = vcmp.ne.f32.partialorder %v587, 0.0
  %590 = vrot.lane.b32.xlu0 %v580, 96
  %v591 = vpop.permute.xlu0 %590
  %v593 = vsel %vm588, %v591, %v479
  %595 = vrot.lane.b32.xlu0 %v586, 32
  %v596 = vpop.permute.xlu0 %595
  %v598 = vsel %vm588, %v596, %v484
  %v600 = vsel %vm32, %v598, 0
  %602 = vmatprep.subr.mxu0 0.0
  %603 = vmatpush1.msra.mxu0 %v20
  %604 = vmatprep.subr.mxu0 0.0
  %605 = vmatpush1.msra.mxu0 %v21
  %606 = vmatprep.subr.mxu0 0.0
  %607 = vmatpush1.msra.mxu0 %v22
  %608 = vmatprep.subr.mxu0 0.0
  %609 = vmatpush1.msra.mxu0 %v23
  %610 = vmatprep.subr.mxu0 0.0
  %611 = vmatpush1.msra.mxu0 0.0
  %612 = vmatprep.subr.mxu0 0.0
  %613 = vmatpush1.msra.mxu0 0.0
  %614 = vmatprep.subr.mxu0 0.0
  %615 = vmatpush1.msra.mxu0 0.0
  %616 = vmatprep.subr.mxu0 0.0
  %617 = vmatpush1.msra.mxu0 0.0
  %618 = vmatprep.subr.mxu0 0.0
  %619 = vmatpush1.msra.mxu0 0.0
  %620 = vmatprep.subr.mxu0 0.0
  %621 = vmatpush1.msra.mxu0 0.0
  %622 = vmatprep.subr.mxu0 0.0
  %623 = vmatpush1.msra.mxu0 0.0
  %624 = vmatprep.subr.mxu0 0.0
  %625 = vmatpush1.msra.mxu0 0.0
  %626 = vmatprep.subr.mxu0 0.0
  %627 = vmatpush1.msra.mxu0 0.0
  %628 = vmatprep.subr.mxu0 0.0
  %629 = vmatpush1.msra.mxu0 0.0
  %630 = vmatprep.subr.mxu0 0.0
  %631 = vmatpush1.msra.mxu0 0.0
  %632 = vmatprep.subr.mxu0 0.0
  %633 = vmatpush1.msra.mxu0 0.0
  %634 = vmatprep.subr.mxu0 0.0
  %635 = vmatpush1.msra.mxu0 0.0
  %636 = vmatprep.subr.mxu0 0.0
  %637 = vmatpush1.msra.mxu0 0.0
  %638 = vmatprep.subr.mxu0 0.0
  %639 = vmatpush1.msra.mxu0 0.0
  %640 = vmatprep.subr.mxu0 0.0
  %641 = vmatpush1.msra.mxu0 0.0
  %642 = vmatprep.subr.mxu0 0.0
  %643 = vmatpush1.msra.mxu0 0.0
  %644 = vmatprep.subr.mxu0 0.0
  %645 = vmatpush1.msra.mxu0 0.0
  %646 = vmatprep.subr.mxu0 0.0
  %647 = vmatpush1.msra.mxu0 0.0
  %648 = vmatprep.subr.mxu0 0.0
  %649 = vmatpush1.msra.mxu0 0.0
  %650 = vmatprep.subr.mxu0 0.0
  %651 = vmatpush1.msra.mxu0 0.0
  %652 = vmatprep.subr.mxu0 0.0
  %653 = vmatpush1.msra.mxu0 0.0
  %654 = vmatprep.subr.mxu0 0.0
  %655 = vmatpush1.msra.mxu0 0.0
  %656 = vmatprep.subr.mxu0 0.0
  %657 = vmatpush1.msra.mxu0 0.0
  %658 = vmatprep.subr.mxu0 0.0
  %659 = vmatpush1.msra.mxu0 0.0
  %660 = vmatprep.subr.mxu0 0.0
  %661 = vmatpush1.msra.mxu0 0.0
  %662 = vmatprep.subr.mxu0 0.0
  %663 = vmatpush1.msra.mxu0 0.0
  %664 = vmatprep.subr.mxu0 0.0
  %665 = vmatpush1.msra.mxu0 0.0
  %666 = vmatprep.mubr.f32.mxu0 0.0
  %667 = vmatmul.mubr.f32.gmra.mrb[0].mxu0 %v600
  %v668 = vpop.f32.mrb[0].mxu0
  %v669 = vadd.f32 0.0, %v668
  %v670 = vpop.f32.mrb[0].mxu0
  %671 = vdwg.mxu0
  %v672 = vadd.f32 %v29, %v669
  %v673 = vxor.u32 %v672, 2147483648
  %v674 = vmul.f32 %v673, 1.442695
  %v675 = vpow.pop %v674
  %v676 = vadd.f32 %v675, 1.0
  %v677 = vrcp.pop %v676
  %v678 = vmul.f32 1.0, %v677
  %v679 = vtanh.pop %v672
  %681 = vrot.lane.b32.xlu0 %v593, 32
  %v682 = vpop.permute.xlu0 %681
  %v684 = vmul.f32 %v678, %v682
  %686 = vrot.lane.b32.xlu0 %v679, 64
  %v687 = vpop.permute.xlu0 %686
  %v689 = vmul.f32 %v678, %v687
  %691 = vrot.lane.b32.xlu0 %v689, 32
  %v692 = vpop.permute.xlu0 %691
  %v694 = vadd.f32 %v684, %v692
  %v695 = vtanh.pop %v694
  %697 = vrot.lane.b32.xlu0 %v695, 64
  %v698 = vpop.permute.xlu0 %697
  %v700 = vmul.f32 %v678, %v698
  %v701 = vld [vmem:[%s1 + $0x28] sm:$0xff]
  %vm702 = vcmp.ne.f32.partialorder %v701, 0.0
  %704 = vrot.lane.b32.xlu0 %v694, 96
  %v705 = vpop.permute.xlu0 %704
  %v707 = vsel %vm702, %v705, %v593
  %709 = vrot.lane.b32.xlu0 %v700, 32
  %v710 = vpop.permute.xlu0 %709
  %v712 = vsel %vm702, %v710, %v598
  %v714 = vsel %vm32, %v712, 0
  %716 = vmatprep.subr.mxu0 0.0
  %717 = vmatpush1.msra.mxu0 %v20
  %718 = vmatprep.subr.mxu0 0.0
  %719 = vmatpush1.msra.mxu0 %v21
  %720 = vmatprep.subr.mxu0 0.0
  %721 = vmatpush1.msra.mxu0 %v22
  %722 = vmatprep.subr.mxu0 0.0
  %723 = vmatpush1.msra.mxu0 %v23
  %724 = vmatprep.subr.mxu0 0.0
  %725 = vmatpush1.msra.mxu0 0.0
  %726 = vmatprep.subr.mxu0 0.0
  %727 = vmatpush1.msra.mxu0 0.0
  %728 = vmatprep.subr.mxu0 0.0
  %729 = vmatpush1.msra.mxu0 0.0
  %730 = vmatprep.subr.mxu0 0.0
  %731 = vmatpush1.msra.mxu0 0.0
  %732 = vmatprep.subr.mxu0 0.0
  %733 = vmatpush1.msra.mxu0 0.0
  %734 = vmatprep.subr.mxu0 0.0
  %735 = vmatpush1.msra.mxu0 0.0
  %736 = vmatprep.subr.mxu0 0.0
  %737 = vmatpush1.msra.mxu0 0.0
  %738 = vmatprep.subr.mxu0 0.0
  %739 = vmatpush1.msra.mxu0 0.0
  %740 = vmatprep.subr.mxu0 0.0
  %741 = vmatpush1.msra.mxu0 0.0
  %742 = vmatprep.subr.mxu0 0.0
  %743 = vmatpush1.msra.mxu0 0.0
  %744 = vmatprep.subr.mxu0 0.0
  %745 = vmatpush1.msra.mxu0 0.0
  %746 = vmatprep.subr.mxu0 0.0
  %747 = vmatpush1.msra.mxu0 0.0
  %748 = vmatprep.subr.mxu0 0.0
  %749 = vmatpush1.msra.mxu0 0.0
  %750 = vmatprep.subr.mxu0 0.0
  %751 = vmatpush1.msra.mxu0 0.0
  %752 = vmatprep.subr.mxu0 0.0
  %753 = vmatpush1.msra.mxu0 0.0
  %754 = vmatprep.subr.mxu0 0.0
  %755 = vmatpush1.msra.mxu0 0.0
  %756 = vmatprep.subr.mxu0 0.0
  %757 = vmatpush1.msra.mxu0 0.0
  %758 = vmatprep.subr.mxu0 0.0
  %759 = vmatpush1.msra.mxu0 0.0
  %760 = vmatprep.subr.mxu0 0.0
  %761 = vmatpush1.msra.mxu0 0.0
  %762 = vmatprep.subr.mxu0 0.0
  %763 = vmatpush1.msra.mxu0 0.0
  %764 = vmatprep.subr.mxu0 0.0
  %765 = vmatpush1.msra.mxu0 0.0
  %766 = vmatprep.subr.mxu0 0.0
  %767 = vmatpush1.msra.mxu0 0.0
  %768 = vmatprep.subr.mxu0 0.0
  %769 = vmatpush1.msra.mxu0 0.0
  %770 = vmatprep.subr.mxu0 0.0
  %771 = vmatpush1.msra.mxu0 0.0
  %772 = vmatprep.subr.mxu0 0.0
  %773 = vmatpush1.msra.mxu0 0.0
  %774 = vmatprep.subr.mxu0 0.0
  %775 = vmatpush1.msra.mxu0 0.0
  %776 = vmatprep.subr.mxu0 0.0
  %777 = vmatpush1.msra.mxu0 0.0
  %778 = vmatprep.subr.mxu0 0.0
  %779 = vmatpush1.msra.mxu0 0.0
  %780 = vmatprep.mubr.f32.mxu0 0.0
  %781 = vmatmul.mubr.f32.gmra.mrb[0].mxu0 %v714
  %v782 = vpop.f32.mrb[0].mxu0
  %v783 = vadd.f32 0.0, %v782
  %v784 = vpop.f32.mrb[0].mxu0
  %785 = vdwg.mxu0
  %v786 = vadd.f32 %v30, %v783
  %v787 = vxor.u32 %v786, 2147483648
  %v788 = vmul.f32 %v787, 1.442695
  %v789 = vpow.pop %v788
  %v790 = vadd.f32 %v789, 1.0
  %v791 = vrcp.pop %v790
  %v792 = vmul.f32 1.0, %v791
  %v793 = vtanh.pop %v786
  %795 = vrot.lane.b32.xlu0 %v707, 32
  %v796 = vpop.permute.xlu0 %795
  %v798 = vmul.f32 %v792, %v796
  %800 = vrot.lane.b32.xlu0 %v793, 64
  %v801 = vpop.permute.xlu0 %800
  %v803 = vmul.f32 %v792, %v801
  %805 = vrot.lane.b32.xlu0 %v803, 32
  %v806 = vpop.permute.xlu0 %805
  %v808 = vadd.f32 %v798, %v806
  %v809 = vtanh.pop %v808
  %811 = vrot.lane.b32.xlu0 %v809, 64
  %v812 = vpop.permute.xlu0 %811
  %v814 = vmul.f32 %v792, %v812
  %v815 = vld [vmem:[%s1 + $0x30] sm:$0xff]
  %vm816 = vcmp.ne.f32.partialorder %v815, 0.0
  %818 = vrot.lane.b32.xlu0 %v808, 96
  %v819 = vpop.permute.xlu0 %818
  %v821 = vsel %vm816, %v819, %v707
  %823 = vrot.lane.b32.xlu0 %v814, 32
  %v824 = vpop.permute.xlu0 %823
  %v826 = vsel %vm816, %v824, %v712
  %v828 = vsel %vm32, %v826, 0
  %830 = vmatprep.subr.mxu0 0.0
  %831 = vmatpush1.msra.mxu0 %v20
  %832 = vmatprep.subr.mxu0 0.0
  %833 = vmatpush1.msra.mxu0 %v21
  %834 = vmatprep.subr.mxu0 0.0
  %835 = vmatpush1.msra.mxu0 %v22
  %836 = vmatprep.subr.mxu0 0.0
  %837 = vmatpush1.msra.mxu0 %v23
  %838 = vmatprep.subr.mxu0 0.0
  %839 = vmatpush1.msra.mxu0 0.0
  %840 = vmatprep.subr.mxu0 0.0
  %841 = vmatpush1.msra.mxu0 0.0
  %842 = vmatprep.subr.mxu0 0.0
  %843 = vmatpush1.msra.mxu0 0.0
  %844 = vmatprep.subr.mxu0 0.0
  %845 = vmatpush1.msra.mxu0 0.0
  %846 = vmatprep.subr.mxu0 0.0
  %847 = vmatpush1.msra.mxu0 0.0
  %848 = vmatprep.subr.mxu0 0.0
  %849 = vmatpush1.msra.mxu0 0.0
  %850 = vmatprep.subr.mxu0 0.0
  %851 = vmatpush1.msra.mxu0 0.0
  %852 = vmatprep.subr.mxu0 0.0
  %853 = vmatpush1.msra.mxu0 0.0
  %854 = vmatprep.subr.mxu0 0.0
  %855 = vmatpush1.msra.mxu0 0.0
  %856 = vmatprep.subr.mxu0 0.0
  %857 = vmatpush1.msra.mxu0 0.0
  %858 = vmatprep.subr.mxu0 0.0
  %859 = vmatpush1.msra.mxu0 0.0
  %860 = vmatprep.subr.mxu0 0.0
  %861 = vmatpush1.msra.mxu0 0.0
  %862 = vmatprep.subr.mxu0 0.0
  %863 = vmatpush1.msra.mxu0 0.0
  %864 = vmatprep.subr.mxu0 0.0
  %865 = vmatpush1.msra.mxu0 0.0
  %866 = vmatprep.subr.mxu0 0.0
  %867 = vmatpush1.msra.mxu0 0.0
  %868 = vmatprep.subr.mxu0 0.0
  %869 = vmatpush1.msra.mxu0 0.0
  %870 = vmatprep.subr.mxu0 0.0
  %871 = vmatpush1.msra.mxu0 0.0
  %872 = vmatprep.subr.mxu0 0.0
  %873 = vmatpush1.msra.mxu0 0.0
  %874 = vmatprep.subr.mxu0 0.0
  %875 = vmatpush1.msra.mxu0 0.0
  %876 = vmatprep.subr.mxu0 0.0
  %877 = vmatpush1.msra.mxu0 0.0
  %878 = vmatprep.subr.mxu0 0.0
  %879 = vmatpush1.msra.mxu0 0.0
  %880 = vmatprep.subr.mxu0 0.0
  %881 = vmatpush1.msra.mxu0 0.0
  %882 = vmatprep.subr.mxu0 0.0
  %883 = vmatpush1.msra.mxu0 0.0
  %884 = vmatprep.subr.mxu0 0.0
  %885 = vmatpush1.msra.mxu0 0.0
  %886 = vmatprep.subr.mxu0 0.0
  %887 = vmatpush1.msra.mxu0 0.0
  %888 = vmatprep.subr.mxu0 0.0
  %889 = vmatpush1.msra.mxu0 0.0
  %890 = vmatprep.subr.mxu0 0.0
  %891 = vmatpush1.msra.mxu0 0.0
  %892 = vmatprep.subr.mxu0 0.0
  %893 = vmatpush1.msra.mxu0 0.0
  %894 = vmatprep.mubr.f32.mxu0 0.0
  %895 = vmatmul.mubr.f32.gmra.mrb[0].mxu0 %v828
  %v896 = vpop.f32.mrb[0].mxu0
  %v897 = vadd.f32 0.0, %v896
  %v898 = vpop.f32.mrb[0].mxu0
  %899 = vdwg.mxu0
  %v900 = vadd.f32 %v31, %v897
  %v901 = vxor.u32 %v900, 2147483648
  %v902 = vmul.f32 %v901, 1.442695
  %v903 = vpow.pop %v902
  %v904 = vadd.f32 %v903, 1.0
  %v905 = vrcp.pop %v904
  %v906 = vmul.f32 1.0, %v905
  %v907 = vtanh.pop %v900
  %909 = vrot.lane.b32.xlu0 %v821, 32
  %v910 = vpop.permute.xlu0 %909
  %v912 = vmul.f32 %v906, %v910
  %914 = vrot.lane.b32.xlu0 %v907, 64
  %v915 = vpop.permute.xlu0 %914
  %v917 = vmul.f32 %v906, %v915
  %919 = vrot.lane.b32.xlu0 %v917, 32
  %v920 = vpop.permute.xlu0 %919
  %v922 = vadd.f32 %v912, %v920
  %v923 = vtanh.pop %v922
  %925 = vrot.lane.b32.xlu0 %v923, 64
  %v926 = vpop.permute.xlu0 %925
  %v928 = vmul.f32 %v906, %v926
  %v929 = vld [vmem:[%s1 + $0x38] sm:$0xff]
  %vm930 = vcmp.ne.f32.partialorder %v929, 0.0
  %932 = vrot.lane.b32.xlu0 %v928, 32
  %v933 = vpop.permute.xlu0 %932
  %v935 = vsel %vm930, %v933, %v826
  %v936 = vld [vmem:[%s3] sm:$0xff]
  %v937 = vld [vmem:[%s3 + $0x8] sm:$0xff]
  %v938 = vld [vmem:[%s3 + $0x10] sm:$0xff]
  %v939 = vld [vmem:[%s3 + $0x18] sm:$0xff]
  %v940 = vld [vmem:[%s4] sm:$0x1]
  %v942 = vlaneseq
  %v943 = vshrl.u32 %v942, 7
  %v944 = vsub.s32 0, %v943
  %v945 = vrot.slane %v940, %v944
  %v948 = vsel %vm32, %v935, 0
  %950 = vmatprep.subr.mxu0 0.0
  %951 = vmatpush1.msra.mxu0 %v936
  %952 = vmatprep.subr.mxu0 0.0
  %953 = vmatpush1.msra.mxu0 %v937
  %954 = vmatprep.subr.mxu0 0.0
  %955 = vmatpush1.msra.mxu0 %v938
  %956 = vmatprep.subr.mxu0 0.0
  %957 = vmatpush1.msra.mxu0 %v939
  %958 = vmatprep.subr.mxu0 0.0
  %959 = vmatpush1.msra.mxu0 0.0
  %960 = vmatprep.subr.mxu0 0.0
  %961 = vmatpush1.msra.mxu0 0.0
  %962 = vmatprep.subr.mxu0 0.0
  %963 = vmatpush1.msra.mxu0 0.0
  %964 = vmatprep.subr.mxu0 0.0
  %965 = vmatpush1.msra.mxu0 0.0
  %966 = vmatprep.subr.mxu0 0.0
  %967 = vmatpush1.msra.mxu0 0.0
  %968 = vmatprep.subr.mxu0 0.0
  %969 = vmatpush1.msra.mxu0 0.0
  %970 = vmatprep.subr.mxu0 0.0
  %971 = vmatpush1.msra.mxu0 0.0
  %972 = vmatprep.subr.mxu0 0.0
  %973 = vmatpush1.msra.mxu0 0.0
  %974 = vmatprep.subr.mxu0 0.0
  %975 = vmatpush1.msra.mxu0 0.0
  %976 = vmatprep.subr.mxu0 0.0
  %977 = vmatpush1.msra.mxu0 0.0
  %978 = vmatprep.subr.mxu0 0.0
  %979 = vmatpush1.msra.mxu0 0.0
  %980 = vmatprep.subr.mxu0 0.0
  %981 = vmatpush1.msra.mxu0 0.0
  %982 = vmatprep.subr.mxu0 0.0
  %983 = vmatpush1.msra.mxu0 0.0
  %984 = vmatprep.subr.mxu0 0.0
  %985 = vmatpush1.msra.mxu0 0.0
  %986 = vmatprep.subr.mxu0 0.0
  %987 = vmatpush1.msra.mxu0 0.0
  %988 = vmatprep.subr.mxu0 0.0
  %989 = vmatpush1.msra.mxu0 0.0
  %990 = vmatprep.subr.mxu0 0.0
  %991 = vmatpush1.msra.mxu0 0.0
  %992 = vmatprep.subr.mxu0 0.0
  %993 = vmatpush1.msra.mxu0 0.0
  %994 = vmatprep.subr.mxu0 0.0
  %995 = vmatpush1.msra.mxu0 0.0
  %996 = vmatprep.subr.mxu0 0.0
  %997 = vmatpush1.msra.mxu0 0.0
  %998 = vmatprep.subr.mxu0 0.0
  %999 = vmatpush1.msra.mxu0 0.0
  %1000 = vmatprep.subr.mxu0 0.0
  %1001 = vmatpush1.msra.mxu0 0.0
  %1002 = vmatprep.subr.mxu0 0.0
  %1003 = vmatpush1.msra.mxu0 0.0
  %1004 = vmatprep.subr.mxu0 0.0
  %1005 = vmatpush1.msra.mxu0 0.0
  %1006 = vmatprep.subr.mxu0 0.0
  %1007 = vmatpush1.msra.mxu0 0.0
  %1008 = vmatprep.subr.mxu0 0.0
  %1009 = vmatpush1.msra.mxu0 0.0
  %1010 = vmatprep.subr.mxu0 0.0
  %1011 = vmatpush1.msra.mxu0 0.0
  %1012 = vmatprep.subr.mxu0 0.0
  %1013 = vmatpush1.msra.mxu0 0.0
  %1014 = vmatprep.mubr.f32.mxu0 0.0
  %1015 = vmatmul.mubr.f32.gmra.mrb[0].mxu0 %v948
  %v1016 = vpop.f32.mrb[0].mxu0
  %v1017 = vadd.f32 %v945, %v1016
  %v1018 = vpop.f32.mrb[0].mxu0
  %1019 = vdwg.mxu0
  %1020 = vst [vmem:[%s5] sm:$0xff] %v1017
  // Predicated region
  $region22: #{sentiment_lstm_forward.1} parent=0 // pred_check
    _
  $region23: #{sentiment_lstm_forward.1} parent=0 // pred_check_branch
    %1022 = sbr.rel (0) target = $region25
  $region24: #{sentiment_lstm_forward.1} parent=0 // pred_region
    _
  $region25: #{sentiment_lstm_forward.1} parent=0 // pred_fallthru
    _
  // Predicated region
  $region26: #{sentiment_lstm_forward.1} parent=0 // pred_check
    _
  $region27: #{sentiment_lstm_forward.1} parent=0 // pred_check_branch
    %1024 = sbr.rel (0) target = $region29
  $region28: #{sentiment_lstm_forward.1} parent=0 // pred_region
    _
  $region29: #{sentiment_lstm_forward.1} parent=0 // pred_fallthru
    _

</llo_original>
